<compile_context>
chip_gen: v7x
topology: tpu7x:2x2x1
jax: 0.10.0
libtpu: 0.0.40
codegen_flags: <defaults>
</compile_context>

<pallas_src>
import jax
import jax.numpy as jnp
from jax import lax
from jax.experimental import pallas as pl
from jax.experimental.pallas import tpu as pltpu

FEATURE_EMBED_DIM = 16
COS_EPS = 1e-6


def _make_listener_kernel(B, N, E):
    eps2 = COS_EPS * COS_EPS  # ATen clamps ||c||^2 * ||f||^2 at eps^2

    def kernel(f_ref, c_ref, w_ref, b_ref, out_ref):
        # f_ref: (B*N, D) feature rows      c_ref: (B, D) comm rows
        # w_ref: (D, 2E) = [Wf | Wc]        b_ref: (1, 2E) = [bf | bc]
        # out_ref: (B, N) lane-dense log-softmax logits
        w = w_ref[...]
        b = b_ref[...]

        # Two small MXU matmuls against the pre-fused weight; f32 accumulation.
        ef = (jnp.dot(f_ref[...], w, preferred_element_type=jnp.float32) + b)[:, :E]
        ef = ef.reshape(B, N, E)                                             # (B, N, E)
        ec = (jnp.dot(c_ref[...], w, preferred_element_type=jnp.float32) + b)[:, E:]  # (B, E)

        # Cosine similarity along E — PyTorch ATen semantics: clamp the product of squared norms.
        dot = jnp.sum(ec[:, None, :] * ef, axis=-1)                          # (B, N)
        sf = jnp.sum(ef * ef, axis=-1)                                       # (B, N)
        sc = jnp.sum(ec * ec, axis=-1, keepdims=True)                        # (B, 1)
        cos = dot * lax.rsqrt(jnp.maximum(sf * sc, eps2))                    # (B, N)

        # log_softmax over the N candidate images (lane axis).
        m = jnp.max(cos, axis=-1, keepdims=True)                             # (B, 1)
        lse = m + jnp.log(jnp.sum(jnp.exp(cos - m), axis=-1, keepdims=True))
        out_ref[...] = cos - lse

    return kernel


def fuse_listener_params(wc, bc, wf, bf):
    """Init-time (NOT per-call): fuse the two Linear layers' params into one operand set."""
    E = wc.shape[1]
    w = jnp.concatenate([wf, wc], axis=1)                                    # (D, 2E)
    b = jnp.concatenate([bf.reshape(1, E), bc.reshape(1, E)], axis=1)        # (1, 2E)
    return w, b


@jax.jit
def listener_forward(comm_embedding, features, w_fused, b_fused):
    """comm_embedding: (B, 1, D); features: (B, N, D); fused weight (D, 2E), fused bias (1, 2E).
    Returns log-softmax logits of shape (B, N)."""
    B, one, D = comm_embedding.shape
    assert one == 1
    N = features.shape[1]
    E = w_fused.shape[1] // 2

    f2d = features.reshape(B * N, D)          # contiguous -> metadata-only reshape
    c2d = comm_embedding.reshape(B, D)

    # Whole problem in a single invocation (grid=()); all operands resident in VMEM.
    return pl.pallas_call(
        _make_listener_kernel(B, N, E),
        out_shape=jax.ShapeDtypeStruct((B, N), jnp.float32),
        in_specs=[pl.BlockSpec(memory_space=pltpu.MemorySpace.VMEM)] * 4,
        out_specs=pl.BlockSpec(memory_space=pltpu.MemorySpace.VMEM),
    )(f2d, c2d, w_fused, b_fused)


def listener_ref(comm_embedding, features, wc, bc, wf, bf):
    """Pure-JAX reference matching PyTorch Listener.forward (ATen cosine_similarity eps)."""
    ec = comm_embedding @ wc + bc                                 # (B, 1, E)
    ef = features @ wf + bf                                       # (B, N, E)
    w12 = jnp.sum(ec * ef, axis=-1)                               # (B, N)
    w1 = jnp.sum(ec * ec, axis=-1)                                # (B, 1)
    w2 = jnp.sum(ef * ef, axis=-1)                                # (B, N)
    cos = w12 / jnp.sqrt(jnp.maximum(w1 * w2, COS_EPS * COS_EPS))
    return jax.nn.log_softmax(cos, axis=1)


if __name__ == "__main__":
    B, N, D, E = 2, 8, 32, FEATURE_EMBED_DIM

    key = jax.random.PRNGKey(0)
    k = jax.random.split(key, 6)
    bound = 1.0 / float(jnp.sqrt(jnp.float32(D)))
    # nn.Linear-style deterministic init (weights stored as (in_features, out_features))
    wc = jax.random.uniform(k[0], (D, E), jnp.float32, -bound, bound)
    bc = jax.random.uniform(k[1], (E,), jnp.float32, -bound, bound)
    wf = jax.random.uniform(k[2], (D, E), jnp.float32, -bound, bound)
    bf = jax.random.uniform(k[3], (E,), jnp.float32, -bound, bound)

    comm = jax.random.normal(k[4], (B, 1, D), jnp.float32)    # comm_embedding
    feats = jax.random.normal(k[5], (B, N, D), jnp.float32)   # features

    # Init-time fusion (done once, outside the per-call path).
    w_fused, b_fused = fuse_listener_params(wc, bc, wf, bf)
    w_fused, b_fused = jax.block_until_ready((w_fused, b_fused))

    logits = listener_forward(comm, feats, w_fused, b_fused)
    jax.block_until_ready(logits)

    ref = listener_ref(comm, feats, wc, bc, wf, bf)
    assert logits.shape == (B, N), logits.shape
    assert jnp.allclose(logits, ref, atol=1e-5, rtol=1e-5), (logits, ref)
    print("KERNEL_OK")
</pallas_src>

<mosaic_0001>
module attributes {stable_mosaic.version = 11 : i64} {
  func.func @kernel(%arg0: memref<16x32xf32, #tpu.memory_space<vmem>>, %arg1: memref<2x32xf32, #tpu.memory_space<vmem>>, %arg2: memref<32x32xf32, #tpu.memory_space<vmem>>, %arg3: memref<1x32xf32, #tpu.memory_space<vmem>>, %arg4: memref<2x8xf32, #tpu.memory_space<vmem>>) attributes {dimension_semantics = [], scalar_prefetch = 0 : i64, scratch_operands = 0 : i64, tpu.core_type = #tpu.core_type<tc>} {
    %c0 = arith.constant 0 : index
    %c0_0 = arith.constant 0 : index
    %0 = vector.load %arg2[%c0, %c0_0] : memref<32x32xf32, #tpu.memory_space<vmem>>, vector<32x32xf32>
    %c0_1 = arith.constant 0 : index
    %c0_2 = arith.constant 0 : index
    %1 = vector.load %arg3[%c0_1, %c0_2] : memref<1x32xf32, #tpu.memory_space<vmem>>, vector<1x32xf32>
    %c0_3 = arith.constant 0 : index
    %c0_4 = arith.constant 0 : index
    %2 = vector.load %arg0[%c0_3, %c0_4] : memref<16x32xf32, #tpu.memory_space<vmem>>, vector<16x32xf32>
    %cst = arith.constant dense<0.000000e+00> : vector<16x32xf32>
    %3 = tpu.matmul %2, %0, %cst {dimension_numbers = #tpu.dot_dimension_numbers<[1], [0], [0], [1], [0, 0, 1, 1], [], []>} : vector<16x32xf32>, vector<32x32xf32>, vector<16x32xf32> -> vector<16x32xf32>
    %4 = vector.broadcast %1 : vector<1x32xf32> to vector<16x32xf32>
    %5 = arith.addf %3, %4 : vector<16x32xf32>
    %6 = vector.extract_strided_slice %5 {offsets = [0, 0], sizes = [16, 16], strides = [1, 1]} : vector<16x32xf32> to vector<16x16xf32>
    %7 = vector.shape_cast %6 : vector<16x16xf32> to vector<2x8x16xf32>
    %c0_5 = arith.constant 0 : index
    %c0_6 = arith.constant 0 : index
    %8 = vector.load %arg1[%c0_5, %c0_6] : memref<2x32xf32, #tpu.memory_space<vmem>>, vector<2x32xf32>
    %cst_7 = arith.constant dense<0.000000e+00> : vector<2x32xf32>
    %9 = tpu.matmul %8, %0, %cst_7 {dimension_numbers = #tpu.dot_dimension_numbers<[1], [0], [0], [1], [0, 0, 1, 1], [], []>} : vector<2x32xf32>, vector<32x32xf32>, vector<2x32xf32> -> vector<2x32xf32>
    %10 = vector.broadcast %1 : vector<1x32xf32> to vector<2x32xf32>
    %11 = arith.addf %9, %10 : vector<2x32xf32>
    %12 = vector.extract_strided_slice %11 {offsets = [0, 16], sizes = [2, 16], strides = [1, 1]} : vector<2x32xf32> to vector<2x16xf32>
    %13 = vector.shape_cast %12 : vector<2x16xf32> to vector<2x1x16xf32>
    %14 = vector.broadcast %13 : vector<2x1x16xf32> to vector<2x8x16xf32>
    %15 = arith.mulf %14, %7 : vector<2x8x16xf32>
    %cst_8 = arith.constant dense<0.000000e+00> : vector<2x8xf32>
    %16 = vector.multi_reduction <add>, %15, %cst_8 [2] : vector<2x8x16xf32> to vector<2x8xf32>
    %17 = arith.mulf %7, %7 : vector<2x8x16xf32>
    %cst_9 = arith.constant dense<0.000000e+00> : vector<2x8xf32>
    %18 = vector.multi_reduction <add>, %17, %cst_9 [2] : vector<2x8x16xf32> to vector<2x8xf32>
    %19 = arith.mulf %12, %12 : vector<2x16xf32>
    %cst_10 = arith.constant dense<0.000000e+00> : vector<2xf32>
    %20 = vector.multi_reduction <add>, %19, %cst_10 [1] : vector<2x16xf32> to vector<2xf32>
    %21 = vector.shape_cast %20 : vector<2xf32> to vector<2x1xf32>
    %22 = vector.broadcast %21 : vector<2x1xf32> to vector<2x8xf32>
    %23 = arith.mulf %18, %22 : vector<2x8xf32>
    %cst_11 = arith.constant 9.99999996E-13 : f32
    %24 = vector.broadcast %cst_11 : f32 to vector<2x8xf32>
    %25 = arith.maximumf %23, %24 : vector<2x8xf32>
    %26 = math.rsqrt %25 : vector<2x8xf32>
    %27 = arith.mulf %16, %26 : vector<2x8xf32>
    %cst_12 = arith.constant dense<0xFF800000> : vector<2xf32>
    %28 = vector.multi_reduction <maximumf>, %27, %cst_12 [1] : vector<2x8xf32> to vector<2xf32>
    %29 = vector.shape_cast %28 : vector<2xf32> to vector<2x1xf32>
    %30 = vector.broadcast %29 : vector<2x1xf32> to vector<2x8xf32>
    %31 = arith.subf %27, %30 : vector<2x8xf32>
    %32 = math.exp %31 : vector<2x8xf32>
    %cst_13 = arith.constant dense<0.000000e+00> : vector<2xf32>
    %33 = vector.multi_reduction <add>, %32, %cst_13 [1] : vector<2x8xf32> to vector<2xf32>
    %34 = vector.shape_cast %33 : vector<2xf32> to vector<2x1xf32>
    %35 = math.log %34 : vector<2x1xf32>
    %36 = arith.addf %29, %35 : vector<2x1xf32>
    %37 = vector.broadcast %36 : vector<2x1xf32> to vector<2x8xf32>
    %38 = arith.subf %27, %37 : vector<2x8xf32>
    %c0_14 = arith.constant 0 : index
    %c0_15 = arith.constant 0 : index
    %39 = vector.load %arg4[%c0_14, %c0_15] : memref<2x8xf32, #tpu.memory_space<vmem>>, vector<2x8xf32>
    tpu.vector_store %arg4[%c0_14, %c0_15], %38 {strides = array<i32>} : memref<2x8xf32, #tpu.memory_space<vmem>>, vector<2x8xf32>,
    return
  }
}

</mosaic_0001>

<llo_original>
// kernel: listener_forward.1
$region0: #{listener_forward.1}
  #allocation0 [shape = 'u32[]', space=smem, size = 0x4, offset = 0x4, fixed_abs, tag = 'smem constant byte address 0x4 - core index']
  #allocation1 [shape = 'u32[144,128]{1,0:T(1,128)}', space=vmem, size = 0x12000, scoped, tag = 'internal scratch']
  %s0 = inlined_call_operand.hbm [shape: f32[16,32], index: 0, kind: input, shape index: {}]
  %s1 = inlined_call_operand.vmem [shape: f32[2,32], index: 1, kind: input, shape index: {}]
  %s2 = inlined_call_operand.hbm [shape: f32[32,32], index: 2, kind: input, shape index: {}]
  %s3 = inlined_call_operand.vmem [shape: f32[1,32], index: 3, kind: input, shape index: {}]
  %s4 = inlined_call_operand.hbm [shape: f32[2,8], index: 4, kind: output, shape index: {}]
  %s5 = sld [smem:[#allocation0]]
  $region34: #{listener_forward.1} parent=0
    _
  %s7 = ssub.s32 1, %s5
  %s8 = scalar_select 0, %s7, %s5
  $region1: #{listener_forward.1} parent=0
    #allocation2 [shape = 'u8[8192]{0}', space=vmem, size = 0x2000, scoped, tag = 'input window, operand 0, single buffered']
    #allocation3 [shape = 's32[1]{0}', space=sflag, size = 0x4, scoped, tag = 'scoped memory for listener_forward.1']
    #allocation4 [shape = 's32[1]{0}', space=sflag, size = 0x4, scoped, tag = 'scoped memory for listener_forward.1']
    #allocation5 [shape = 'u8[16384]{0}', space=vmem, size = 0x4000, scoped, tag = 'input window, operand 2, single buffered']
    #allocation6 [shape = 's32[1]{0}', space=sflag, size = 0x4, scoped, tag = 'scoped memory for listener_forward.1']
    #allocation7 [shape = 'u8[1024]{0}', space=vmem, size = 0x400, scoped, tag = 'output window, operand 0, single buffered']
    %9 = vsyncpa [#allocation3], 0
    %10 = vsyncpa [#allocation6], 0
    %11 = vsyncpa [#allocation4], 0
    // Predicated region
    $region2: #{listener_forward.1} parent=1 // pred_check
      _
    $region3: #{listener_forward.1} parent=1 // pred_check_branch
      %13 = sbr.rel (0) target = $region5
    $region4: #{listener_forward.1} parent=1 // pred_region
      %s15 = ssub.s32 256, 256
      %16 = vsyncadd [#allocation3], %s15
      %s17 = sshll.u32 [#allocation2], 4
      %s18 = int_to_ptr.vmem [resolvable:$true] %s17
      %23 = dma.hbm_to_vmem [thread:$0]  %s0, 256, %s18, [#allocation3], 128, 128, 8
    $region5: #{listener_forward.1} parent=1 // pred_fallthru
      _
    // Predicated region
    $region6: #{listener_forward.1} parent=1 // pred_check
      _
    $region7: #{listener_forward.1} parent=1 // pred_check_branch
      %25 = sbr.rel (0) target = $region9
    $region8: #{listener_forward.1} parent=1 // pred_region
      _
    $region9: #{listener_forward.1} parent=1 // pred_fallthru
      _
    // Predicated region
    $region10: #{listener_forward.1} parent=1 // pred_check
      _
    $region11: #{listener_forward.1} parent=1 // pred_check_branch
      %27 = sbr.rel (0) target = $region13
    $region12: #{listener_forward.1} parent=1 // pred_region
      %s29 = ssub.s32 512, 512
      %30 = vsyncadd [#allocation6], %s29
      %s31 = sshll.u32 [#allocation5], 4
      %s32 = int_to_ptr.vmem [resolvable:$true] %s31
      %37 = dma.hbm_to_vmem [thread:$0]  %s2, 512, %s32, [#allocation6], 128, 128, 8
    $region13: #{listener_forward.1} parent=1 // pred_fallthru
      _
    // Predicated region
    $region14: #{listener_forward.1} parent=1 // pred_check
      _
    $region15: #{listener_forward.1} parent=1 // pred_check_branch
      %39 = sbr.rel (0) target = $region17
    $region16: #{listener_forward.1} parent=1 // pred_region
      _
    $region17: #{listener_forward.1} parent=1 // pred_fallthru
      _
    // Predicated region
    $region18: #{listener_forward.1} parent=1 // pred_check
      _
    $region19: #{listener_forward.1} parent=1 // pred_check_branch
      %41 = sbr.rel (0) target = $region21
    $region20: #{listener_forward.1} parent=1 // pred_region
      %42 = dma.done [#allocation3], 256
    $region21: #{listener_forward.1} parent=1 // pred_fallthru
      _
    // Predicated region
    $region22: #{listener_forward.1} parent=1 // pred_check
      _
    $region23: #{listener_forward.1} parent=1 // pred_check_branch
      %44 = sbr.rel (0) target = $region25
    $region24: #{listener_forward.1} parent=1 // pred_region
      %45 = dma.done [#allocation6], 512
    $region25: #{listener_forward.1} parent=1 // pred_fallthru
      _
    %v46 = vld [vmem:[#allocation5] sm:$0xff]
    %v47 = vld [vmem:[#allocation5 + $0x8] sm:$0xff]
    %v48 = vld [vmem:[#allocation5 + $0x10] sm:$0xff]
    %v49 = vld [vmem:[#allocation5 + $0x18] sm:$0xff]
    %v50 = vld [vmem:[%s3] sm:$0x1]
    %v51 = vld [vmem:[#allocation2] sm:$0xff]
    %v52 = vld [vmem:[#allocation2 + $0x8] sm:$0xff]
    %v54 = vlaneseq
    %v55 = vshrl.u32 %v54, 7
    %v56 = vsub.s32 0, %v55
    %v57 = vrot.slane %v50, %v56
    %vm59 = vcmask 261120
    %v61 = vsel %vm59, %v51, 0
    %v64 = vsel %vm59, %v52, 0
    %66 = vmatprep.subr.mxu0 0.0
    %67 = vmatpush1.msra.mxu0 %v46
    %68 = vmatprep.subr.mxu0 0.0
    %69 = vmatpush1.msra.mxu0 %v47
    %70 = vmatprep.subr.mxu0 0.0
    %71 = vmatpush1.msra.mxu0 %v48
    %72 = vmatprep.subr.mxu0 0.0
    %73 = vmatpush1.msra.mxu0 %v49
    %74 = vmatprep.subr.mxu0 0.0
    %75 = vmatpush1.msra.mxu0 0.0
    %76 = vmatprep.subr.mxu0 0.0
    %77 = vmatpush1.msra.mxu0 0.0
    %78 = vmatprep.subr.mxu0 0.0
    %79 = vmatpush1.msra.mxu0 0.0
    %80 = vmatprep.subr.mxu0 0.0
    %81 = vmatpush1.msra.mxu0 0.0
    %82 = vmatprep.subr.mxu0 0.0
    %83 = vmatpush1.msra.mxu0 0.0
    %84 = vmatprep.subr.mxu0 0.0
    %85 = vmatpush1.msra.mxu0 0.0
    %86 = vmatprep.subr.mxu0 0.0
    %87 = vmatpush1.msra.mxu0 0.0
    %88 = vmatprep.subr.mxu0 0.0
    %89 = vmatpush1.msra.mxu0 0.0
    %90 = vmatprep.subr.mxu0 0.0
    %91 = vmatpush1.msra.mxu0 0.0
    %92 = vmatprep.subr.mxu0 0.0
    %93 = vmatpush1.msra.mxu0 0.0
    %94 = vmatprep.subr.mxu0 0.0
    %95 = vmatpush1.msra.mxu0 0.0
    %96 = vmatprep.subr.mxu0 0.0
    %97 = vmatpush1.msra.mxu0 0.0
    %98 = vmatprep.subr.mxu0 0.0
    %99 = vmatpush1.msra.mxu0 0.0
    %100 = vmatprep.subr.mxu0 0.0
    %101 = vmatpush1.msra.mxu0 0.0
    %102 = vmatprep.subr.mxu0 0.0
    %103 = vmatpush1.msra.mxu0 0.0
    %104 = vmatprep.subr.mxu0 0.0
    %105 = vmatpush1.msra.mxu0 0.0
    %106 = vmatprep.subr.mxu0 0.0
    %107 = vmatpush1.msra.mxu0 0.0
    %108 = vmatprep.subr.mxu0 0.0
    %109 = vmatpush1.msra.mxu0 0.0
    %110 = vmatprep.subr.mxu0 0.0
    %111 = vmatpush1.msra.mxu0 0.0
    %112 = vmatprep.subr.mxu0 0.0
    %113 = vmatpush1.msra.mxu0 0.0
    %114 = vmatprep.subr.mxu0 0.0
    %115 = vmatpush1.msra.mxu0 0.0
    %116 = vmatprep.subr.mxu0 0.0
    %117 = vmatpush1.msra.mxu0 0.0
    %118 = vmatprep.subr.mxu0 0.0
    %119 = vmatpush1.msra.mxu0 0.0
    %120 = vmatprep.subr.mxu0 0.0
    %121 = vmatpush1.msra.mxu0 0.0
    %122 = vmatprep.subr.mxu0 0.0
    %123 = vmatpush1.msra.mxu0 0.0
    %124 = vmatprep.subr.mxu0 0.0
    %125 = vmatpush1.msra.mxu0 0.0
    %126 = vmatprep.subr.mxu0 0.0
    %127 = vmatpush1.msra.mxu0 0.0
    %128 = vmatprep.subr.mxu0 0.0
    %129 = vmatpush1.msra.mxu0 0.0
    %130 = vmatprep.mubr.f32.mxu0 0.0
    %131 = vmatmul.mubr.f32.gmra.mrb[0].mxu0 %v61
    %v132 = vpop.f32.mrb[0].mxu0
    %v133 = vadd.f32 %v57, %v132
    %v134 = vpop.f32.mrb[0].mxu0
    %135 = vmatprep.mubr.f32.mxu0 0.0
    %136 = vmatmul.mubr.f32.gmra.mrb[0].mxu0 %v64
    %v137 = vpop.f32.mrb[0].mxu0
    %v138 = vadd.f32 %v57, %v137
    %v139 = vpop.f32.mrb[0].mxu0
    %140 = vdwg.mxu0
    %v141 = vld [vmem:[%s1] sm:$0x3]
    %v143 = vsel %vm59, %v141, 0
    %145 = vmatprep.subr.mxu0 0.0
    %146 = vmatpush1.msra.mxu0 %v46
    %147 = vmatprep.subr.mxu0 0.0
    %148 = vmatpush1.msra.mxu0 %v47
    %149 = vmatprep.subr.mxu0 0.0
    %150 = vmatpush1.msra.mxu0 %v48
    %151 = vmatprep.subr.mxu0 0.0
    %152 = vmatpush1.msra.mxu0 %v49
    %153 = vmatprep.subr.mxu0 0.0
    %154 = vmatpush1.msra.mxu0 0.0
    %155 = vmatprep.subr.mxu0 0.0
    %156 = vmatpush1.msra.mxu0 0.0
    %157 = vmatprep.subr.mxu0 0.0
    %158 = vmatpush1.msra.mxu0 0.0
    %159 = vmatprep.subr.mxu0 0.0
    %160 = vmatpush1.msra.mxu0 0.0
    %161 = vmatprep.subr.mxu0 0.0
    %162 = vmatpush1.msra.mxu0 0.0
    %163 = vmatprep.subr.mxu0 0.0
    %164 = vmatpush1.msra.mxu0 0.0
    %165 = vmatprep.subr.mxu0 0.0
    %166 = vmatpush1.msra.mxu0 0.0
    %167 = vmatprep.subr.mxu0 0.0
    %168 = vmatpush1.msra.mxu0 0.0
    %169 = vmatprep.subr.mxu0 0.0
    %170 = vmatpush1.msra.mxu0 0.0
    %171 = vmatprep.subr.mxu0 0.0
    %172 = vmatpush1.msra.mxu0 0.0
    %173 = vmatprep.subr.mxu0 0.0
    %174 = vmatpush1.msra.mxu0 0.0
    %175 = vmatprep.subr.mxu0 0.0
    %176 = vmatpush1.msra.mxu0 0.0
    %177 = vmatprep.subr.mxu0 0.0
    %178 = vmatpush1.msra.mxu0 0.0
    %179 = vmatprep.subr.mxu0 0.0
    %180 = vmatpush1.msra.mxu0 0.0
    %181 = vmatprep.subr.mxu0 0.0
    %182 = vmatpush1.msra.mxu0 0.0
    %183 = vmatprep.subr.mxu0 0.0
    %184 = vmatpush1.msra.mxu0 0.0
    %185 = vmatprep.subr.mxu0 0.0
    %186 = vmatpush1.msra.mxu0 0.0
    %187 = vmatprep.subr.mxu0 0.0
    %188 = vmatpush1.msra.mxu0 0.0
    %189 = vmatprep.subr.mxu0 0.0
    %190 = vmatpush1.msra.mxu0 0.0
    %191 = vmatprep.subr.mxu0 0.0
    %192 = vmatpush1.msra.mxu0 0.0
    %193 = vmatprep.subr.mxu0 0.0
    %194 = vmatpush1.msra.mxu0 0.0
    %195 = vmatprep.subr.mxu0 0.0
    %196 = vmatpush1.msra.mxu0 0.0
    %197 = vmatprep.subr.mxu0 0.0
    %198 = vmatpush1.msra.mxu0 0.0
    %199 = vmatprep.subr.mxu0 0.0
    %200 = vmatpush1.msra.mxu0 0.0
    %201 = vmatprep.subr.mxu0 0.0
    %202 = vmatpush1.msra.mxu0 0.0
    %203 = vmatprep.subr.mxu0 0.0
    %204 = vmatpush1.msra.mxu0 0.0
    %205 = vmatprep.subr.mxu0 0.0
    %206 = vmatpush1.msra.mxu0 0.0
    %207 = vmatprep.subr.mxu0 0.0
    %208 = vmatpush1.msra.mxu0 0.0
    %209 = vmatprep.mubr.f32.mxu0 0.0
    %210 = vmatmul.mubr.f32.gmra.mrb[0].mxu0 %v143
    %v211 = vpop.f32.mrb[0].mxu0
    %v212 = vadd.f32 %v57, %v211
    %v213 = vpop.f32.mrb[0].mxu0
    %214 = vdwg.mxu0
    %v217 = vunpack.c.l.s4 1966171168
    %v218 = vunpack.c.0.s8 %v217
    %v219 = vlaneseq
    %v220 = vshrl.u32 %v219, 7
    %v221 = vsub.s32 %v218, %v220
    %v222 = vrot.slane %v212, %v221
    %v223 = vcombine.high %v222, %v222
    %v225 = vunpack.c.l.s4 1966171168
    %v226 = vunpack.c.0.s8 %v225
    %v227 = vlaneseq
    %v228 = vshrl.u32 %v227, 7
    %v229 = vsub.s32 %v226, %v228
    %v230 = vrot.slane %v222, %v229
    %v232 = vunpack.c.l.s4 1966171168
    %v233 = vunpack.c.0.s8 %v232
    %v234 = vlaneseq
    %v235 = vshrl.u32 %v234, 7
    %v236 = vsub.s32 %v233, %v235
    %v237 = vrot.slane %v223, %v236
    %v238 = vlaneseq
    %v239 = vshrl.u32 %v238, 7
    %v240 = vsub.s32 0, %v239
    %v241 = vrot.slane %v230, %v240
    %v242 = vlaneseq
    %v243 = vshrl.u32 %v242, 7
    %v244 = vsub.s32 0, %v243
    %v245 = vrot.slane %v237, %v244
    %250 = vrot.lane.b32.xlu0 %v133, 16
    %v251 = vpop.permute.xlu0 %250
    %252 = vrot.lane.b32.xlu0 %v138, 16
    %v253 = vpop.permute.xlu0 %252
    %v256 = vmul.f32 %v241, %v251
    %v257 = vmul.f32 %v245, %v253
    %260 = vrot.lane.b32.xlu0 %v256, 112
    %v261 = vpop.permute.xlu0 %260
    %262 = vrot.lane.b32.xlu0 %v257, 112
    %v263 = vpop.permute.xlu0 %262
    %vm266 = vcmask 130048
    %v267 = vsel %vm266, %v261, 0.0
    %268 = vadd.xlane.f32.xlu0 %v267
    %v269 = vpop.xlane.xlu0 %268
    %v270 = vsel %vm266, %v263, 0.0
    %271 = vadd.xlane.f32.xlu0 %v270
    %v272 = vpop.xlane.xlu0 %271
    %v273 = vmul.f32 %v133, %v133
    %v274 = vmul.f32 %v138, %v138
    %v275 = vsel %vm266, %v273, 0.0
    %276 = vadd.xlane.f32.xlu0 %v275
    %v277 = vpop.xlane.xlu0 %276
    %v278 = vsel %vm266, %v274, 0.0
    %279 = vadd.xlane.f32.xlu0 %v278
    %v280 = vpop.xlane.xlu0 %279
    %v281 = vmul.f32 %v212, %v212
    %283 = vrot.lane.b32.xlu0 %v281, 112
    %v284 = vpop.permute.xlu0 %283
    %vm286 = vcmask 123904
    %v287 = vsel %vm286, %v284, 0.0
    %288 = vadd.xlane.f32.xlu0 %v287
    %v289 = vpop.xlane.xlu0 %288
    %v291 = vlaneseq
    %v292 = vshrl.u32 %v291, 7
    %v293 = vsub.s32 0, %v292
    %v294 = vrot.slane %v289, %v293
    %v295 = vlaneseq
    %v296 = vshrl.u32 %v295, 7
    %v297 = vsub.s32 1, %v296
    %v298 = vrot.slane %v289, %v297
    %v301 = vmul.f32 %v277, %v294
    %v302 = vmul.f32 %v280, %v298
    %v303 = vmax.f32 %v301, 1e-12
    %v304 = vmax.f32 %v302, 1e-12
    %v305 = vrsqrt.pop %v303
    %v306 = vrsqrt.pop %v304
    %v307 = vmul.f32 %v269, %v305
    %v308 = vmul.f32 %v272, %v306
    %311 = vset.pattern.permute.xlu0 0
    %312 = vperm.xlu0 %311, %v307
    %v313 = vpop.permute.xlu0 %312
    %314 = vset.pattern.permute.xlu0 0
    %315 = vperm.xlu0 %314, %v308
    %v316 = vpop.permute.xlu0 %315
    %v317 = vlaneseq
    %v318 = vand.u32 %v317, 127
    %v319 = vlaneseq
    %v320 = vshrl.u32 %v319, 7
    %v321 = vsub.s32 %v318, %v320
    %v322 = vrot.slane %v313, %v321
    %v323 = vlaneseq
    %v324 = vshrl.u32 %v323, 7
    %v325 = vsub.s32 %v318, %v324
    %v326 = vrot.slane %v316, %v325
    %vm327 = vcmask 1041409
    %v328 = vsel %vm327, %v326, %v322
    %vm330 = vcmask 58368
    %v331 = vsel %vm330, %v328, -inf
    %332 = vmax.xlane.f32.xlu0 %v331
    %v333 = vpop.xlane.xlu0 %332
    %v335 = vlaneseq
    %v336 = vshrl.u32 %v335, 7
    %v337 = vsub.s32 0, %v336
    %v338 = vrot.slane %v333, %v337
    %v339 = vlaneseq
    %v340 = vshrl.u32 %v339, 7
    %v341 = vsub.s32 1, %v340
    %v342 = vrot.slane %v333, %v341
    %v345 = vsub.f32 %v307, %v338
    %v346 = vsub.f32 %v308, %v342
    %v347 = vmul.f32 %v345, 1.442695
    %v348 = vpow.pop %v347
    %v349 = vmul.f32 %v346, 1.442695
    %v350 = vpow.pop %v349
    %353 = vset.pattern.permute.xlu0 0
    %354 = vperm.xlu0 %353, %v348
    %v355 = vpop.permute.xlu0 %354
    %356 = vset.pattern.permute.xlu0 0
    %357 = vperm.xlu0 %356, %v350
    %v358 = vpop.permute.xlu0 %357
    %v359 = vlaneseq
    %v360 = vshrl.u32 %v359, 7
    %v361 = vsub.s32 %v318, %v360
    %v362 = vrot.slane %v355, %v361
    %v363 = vlaneseq
    %v364 = vshrl.u32 %v363, 7
    %v365 = vsub.s32 %v318, %v364
    %v366 = vrot.slane %v358, %v365
    %v367 = vsel %vm327, %v366, %v362
    %v369 = vsel %vm330, %v367, 0.0
    %370 = vadd.xlane.f32.xlu0 %v369
    %v371 = vpop.xlane.xlu0 %370
    %v372 = vlog2.pop %v371
    %v373 = vmul.f32 %v372, 0.6931472
    %v374 = vadd.f32 %v333, %v373
    %v376 = vlaneseq
    %v377 = vshrl.u32 %v376, 7
    %v378 = vsub.s32 0, %v377
    %v379 = vrot.slane %v374, %v378
    %v380 = vlaneseq
    %v381 = vshrl.u32 %v380, 7
    %v382 = vsub.s32 1, %v381
    %v383 = vrot.slane %v374, %v382
    %v386 = vsub.f32 %v307, %v379
    %v387 = vsub.f32 %v308, %v383
    %390 = vset.pattern.permute.xlu0 0
    %391 = vperm.xlu0 %390, %v386
    %v392 = vpop.permute.xlu0 %391
    %393 = vset.pattern.permute.xlu0 0
    %394 = vperm.xlu0 %393, %v387
    %v395 = vpop.permute.xlu0 %394
    %v396 = vlaneseq
    %v397 = vshrl.u32 %v396, 7
    %v398 = vsub.s32 %v318, %v397
    %v399 = vrot.slane %v392, %v398
    %v400 = vlaneseq
    %v401 = vshrl.u32 %v400, 7
    %v402 = vsub.s32 %v318, %v401
    %v403 = vrot.slane %v395, %v402
    %v404 = vsel %vm327, %v403, %v399
    %406 = vst.msk [vmem:[#allocation7] sm:$0x3] %vm330, %v404
    // Predicated region
    $region26: #{listener_forward.1} parent=1 // pred_check
      _
    $region27: #{listener_forward.1} parent=1 // pred_check_branch
      %408 = sbr.rel (0) target = $region29
    $region28: #{listener_forward.1} parent=1 // pred_region
      %s410 = ssub.s32 32, 32
      %411 = vsyncadd [#allocation4], %s410
      %s413 = sshll.u32 [#allocation7], 4
      %s414 = int_to_ptr.vmem [resolvable:$true] %s413
      %416 = dma.vmem_to_hbm [thread:$0]  %s414, 32, %s4, [#allocation4]
    $region29: #{listener_forward.1} parent=1 // pred_fallthru
      _
    // Predicated region
    $region30: #{listener_forward.1} parent=1 // pred_check
      _
    $region31: #{listener_forward.1} parent=1 // pred_check_branch
      %418 = sbr.rel (0) target = $region33
    $region32: #{listener_forward.1} parent=1 // pred_region
      %419 = dma.done [#allocation4], 32
    $region33: #{listener_forward.1} parent=1 // pred_fallthru
      _
    %420 = vsyncpa [#allocation3], 1
    %421 = vsyncpa [#allocation6], 1
    %422 = vsyncpa [#allocation4], 1

</llo_original>
